<compile_context>
chip_gen: v7x
topology: tpu7x:2x2x1
jax: 0.10.0
libtpu: 0.0.40
codegen_flags: <defaults>
</compile_context>

<pallas_src>
import jax
import jax.numpy as jnp
from jax.experimental import pallas as pl
from jax.experimental.pallas import tpu as pltpu

INPUT_SIZE = 768  # hard-coded by the slicing in RankMLP.forward


def _round_up(x, m):
    return ((x + m - 1) // m) * m


def _cdiv(a, b):
    return (a + b - 1) // b


def _vmem_capacity_bytes():
    try:
        return int(pltpu.get_tpu_info().vmem_capacity_bytes)
    except Exception:
        return 64 << 20  # conservative fallback: assume v7x-class 64 MiB VMEM


def _rank_mlp_kernel(x_ref, w1_ref, w2_ref, v1_ref, v2_ref, b_ref, o_ref):
    # x tile (TB, 1536): static lane-aligned split (768 % 128 == 0) + in-VMEM bf16 cast.
    xk = x_ref[:, :INPUT_SIZE].astype(jnp.bfloat16)
    xc = x_ref[:, INPUT_SIZE:].astype(jnp.bfloat16)
    # Two dense (TB,768)@(768,Fp) bf16 MXU matmuls, f32 accumulate, ReLU on the VPU.
    h1 = jnp.maximum(
        jnp.dot(xk, w1_ref[...], preferred_element_type=jnp.float32), 0.0)
    h2 = jnp.maximum(
        jnp.dot(xc, w2_ref[...], preferred_element_type=jnp.float32), 0.0)
    # dense3/4/5 folded into v1/v2; contract against h's minor dim (q@k.T pattern)
    # so z comes out lane-major (1, TB) -> dense sigmoid + dense lane store.
    z = (jnp.einsum("of,tf->ot", v1_ref[...], h1,
                    preferred_element_type=jnp.float32)
         + jnp.einsum("of,tf->ot", v2_ref[...], h2,
                      preferred_element_type=jnp.float32)
         + b_ref[0])
    o_ref[...] = jax.nn.sigmoid(z).reshape(o_ref.shape)


def rank_mlp_forward(x, w1, w2, w3, w4, b3, b4, w5, b5, *, block_b=None):
    """x: (B, 2*768).  Returns (B, 1) float32 = RankMLP(x) (dropout = identity)."""
    B = x.shape[0]
    F = w1.shape[1]
    Fp = _round_up(F, 128)                      # lane-dense hidden width

    # ---- host-side parameter folding (tiny weights, one-time) -------------
    w1p = jnp.pad(w1, ((0, 0), (0, Fp - F))).astype(jnp.bfloat16)    # (768, Fp)
    w2p = jnp.pad(w2, ((0, 0), (0, Fp - F))).astype(jnp.bfloat16)
    v1 = jnp.pad((w5[0] * w3[0]).reshape(1, F).astype(jnp.float32),
                 ((0, 0), (0, Fp - F)))                               # (1, Fp)
    v2 = jnp.pad((w5[1] * w4[0]).reshape(1, F).astype(jnp.float32),
                 ((0, 0), (0, Fp - F)))
    bias = (w5[0] * b3 + w5[1] * b4 + b5).reshape(1).astype(jnp.float32)

    # ---- batch tiling ------------------------------------------------------
    vmem_cap = _vmem_capacity_bytes()
    if block_b is None:
        block_b = 4096 if vmem_cap >= (100 << 20) else 2048
    # >= 2 grid tiles whenever B allows (megacore split on v7x); 16-row aligned.
    TB = min(block_b, _round_up(max(_cdiv(B, 2), 1), 16))
    num_tiles = _cdiv(B, TB)

    x_db_bytes = 2 * TB * 2 * INPUT_SIZE * x.dtype.itemsize  # double-buffered x
    vmem_limit = max(32 << 20, min(x_db_bytes + (8 << 20), (vmem_cap * 3) // 4))

    out = pl.pallas_call(
        _rank_mlp_kernel,
        out_shape=jax.ShapeDtypeStruct((num_tiles, 1, TB), jnp.float32),
        grid=(num_tiles,),
        in_specs=[
            # x streams straight from HBM per batch tile (double-buffered);
            # the ragged last tile is masked by the pipeline edge DMA.
            pl.BlockSpec((TB, 2 * INPUT_SIZE), lambda i: (i, 0)),
            # Weights / folded vectors: constant block index -> VMEM-resident.
            pl.BlockSpec((INPUT_SIZE, Fp), lambda i: (0, 0)),
            pl.BlockSpec((INPUT_SIZE, Fp), lambda i: (0, 0)),
            pl.BlockSpec((1, Fp), lambda i: (0, 0)),
            pl.BlockSpec((1, Fp), lambda i: (0, 0)),
            # Folded bias scalar in SMEM.
            pl.BlockSpec(memory_space=pltpu.MemorySpace.SMEM),
        ],
        # Lane-dense output: batch rides the 128-wide lane axis.
        out_specs=pl.BlockSpec((1, 1, TB), lambda i: (i, 0, 0)),
        compiler_params=pltpu.CompilerParams(
            dimension_semantics=("parallel",),   # megacore sharding on v7x
            vmem_limit_bytes=int(vmem_limit),
        ),
    )(x, w1p, w2p, v1, v2, bias)

    # (num_tiles, 1, TB) lane-major -> (B, 1); slots >= B are discarded.
    return out.reshape(num_tiles * TB)[:B].reshape(B, 1)


def init_params(key, input_size, filters):
    """Deterministic synthetic parameters matching RankMLP.__init__ shapes."""
    k1, k2, k3, k4, k5, k6, k7, k8 = jax.random.split(key, 8)
    s_in = 1.0 / jnp.sqrt(jnp.float32(input_size))
    s_f = 1.0 / jnp.sqrt(jnp.float32(filters))
    # Stored pre-transposed relative to PyTorch's (out, in) convention.
    w1 = jax.random.uniform(k1, (input_size, filters), jnp.float32, -s_in, s_in)
    w2 = jax.random.uniform(k2, (input_size, filters), jnp.float32, -s_in, s_in)
    w3 = jax.random.uniform(k3, (1, filters), jnp.float32, -s_f, s_f)
    w4 = jax.random.uniform(k4, (1, filters), jnp.float32, -s_f, s_f)
    b3 = jax.random.uniform(k5, (), jnp.float32, -s_f, s_f)
    b4 = jax.random.uniform(k6, (), jnp.float32, -s_f, s_f)
    s2 = 1.0 / jnp.sqrt(jnp.float32(2))
    w5 = jax.random.uniform(k7, (2,), jnp.float32, -s2, s2)
    b5 = jax.random.uniform(k8, (), jnp.float32, -s2, s2)
    return w1, w2, w3, w4, b3, b4, w5, b5


def reference_forward(x, w1, w2, w3, w4, b3, b4, w5, b5):
    """Plain-JAX f32 reference of RankMLP.forward (dropout = identity)."""
    xk, xc = x[..., :INPUT_SIZE], x[..., INPUT_SIZE:2 * INPUT_SIZE]
    key_out = jnp.maximum(xk @ w1, 0.0) @ w3[0] + b3
    case_out = jnp.maximum(xc @ w2, 0.0) @ w4[0] + b4
    z = w5[0] * key_out + w5[1] * case_out + b5
    return jax.nn.sigmoid(z)[..., None]


if __name__ == "__main__":
    B = 8          # small smoke-test batch; kernel tiles up to 2048/4096 rows
    FILTERS = 32   # hidden filters
    key = jax.random.PRNGKey(0)
    kx, kp = jax.random.split(key)

    x = jax.random.normal(kx, (B, 2 * INPUT_SIZE), dtype=jnp.float32)
    params = init_params(kp, INPUT_SIZE, FILTERS)

    out = rank_mlp_forward(x, *params)
    out = jax.block_until_ready(out)

    ref = reference_forward(x, *params)
    assert out.shape == (B, 1), out.shape
    # bf16 x/W on the MXU (f32 accumulate) -> loosened tolerance vs f32 reference.
    assert jnp.allclose(out, ref, atol=2e-2, rtol=2e-2), (
        float(jnp.max(jnp.abs(out - ref))))

    print("KERNEL_OK")
</pallas_src>

<mosaic_0001>
module attributes {stable_mosaic.version = 11 : i64} {
  func.func @_rank_mlp_kernel(%arg0: i32, %arg1: memref<16x1536xf32, #tpu.memory_space<vmem>>, %arg2: memref<768x128xbf16, #tpu.memory_space<vmem>>, %arg3: memref<768x128xbf16, #tpu.memory_space<vmem>>, %arg4: memref<1x128xf32, #tpu.memory_space<vmem>>, %arg5: memref<1x128xf32, #tpu.memory_space<vmem>>, %arg6: memref<1xf32, #tpu.memory_space<smem>>, %arg7: memref<1x1x16xf32, #tpu.memory_space<vmem>>) attributes {dimension_semantics = [#tpu.dimension_semantics<parallel>], iteration_bounds = array<i64: 1>, scalar_prefetch = 0 : i64, scratch_operands = 0 : i64, tpu.core_type = #tpu.core_type<tc>, window_params = [{transform_indices = @transform_0, window_bounds = array<i64: 16, 1536>}, {pipeline_mode = #tpu.pipeline_mode<synchronous>, transform_indices = @transform_1, window_bounds = array<i64: 768, 128>}, {pipeline_mode = #tpu.pipeline_mode<synchronous>, transform_indices = @transform_2, window_bounds = array<i64: 768, 128>}, {pipeline_mode = #tpu.pipeline_mode<synchronous>, transform_indices = @transform_3, window_bounds = array<i64: 1, 128>}, {pipeline_mode = #tpu.pipeline_mode<synchronous>, transform_indices = @transform_4, window_bounds = array<i64: 1, 128>}, {transform_indices = @transform_5, window_bounds = array<i64: 1>}, {transform_indices = @transform_6, window_bounds = array<i64: 1, 1, 16>}]} {
    %c0 = arith.constant 0 : index
    %c0_0 = arith.constant 0 : index
    %0 = vector.load %arg1[%c0, %c0_0] : memref<16x1536xf32, #tpu.memory_space<vmem>>, vector<16x768xf32>
    %1 = arith.truncf %0 : vector<16x768xf32> to vector<16x768xbf16>
    %c0_1 = arith.constant 0 : index
    %c768 = arith.constant 768 : index
    %2 = vector.load %arg1[%c0_1, %c768] : memref<16x1536xf32, #tpu.memory_space<vmem>>, vector<16x768xf32>
    %3 = arith.truncf %2 : vector<16x768xf32> to vector<16x768xbf16>
    %c0_2 = arith.constant 0 : index
    %c0_3 = arith.constant 0 : index
    %4 = vector.load %arg2[%c0_2, %c0_3] : memref<768x128xbf16, #tpu.memory_space<vmem>>, vector<768x128xbf16>
    %cst = arith.constant dense<0.000000e+00> : vector<16x128xf32>
    %5 = tpu.matmul %1, %4, %cst {dimension_numbers = #tpu.dot_dimension_numbers<[1], [0], [0], [1], [0, 0, 1, 1], [], []>} : vector<16x768xbf16>, vector<768x128xbf16>, vector<16x128xf32> -> vector<16x128xf32>
    %cst_4 = arith.constant 0.000000e+00 : f32
    %6 = vector.broadcast %cst_4 : f32 to vector<16x128xf32>
    %7 = arith.maximumf %5, %6 : vector<16x128xf32>
    %c0_5 = arith.constant 0 : index
    %c0_6 = arith.constant 0 : index
    %8 = vector.load %arg3[%c0_5, %c0_6] : memref<768x128xbf16, #tpu.memory_space<vmem>>, vector<768x128xbf16>
    %cst_7 = arith.constant dense<0.000000e+00> : vector<16x128xf32>
    %9 = tpu.matmul %3, %8, %cst_7 {dimension_numbers = #tpu.dot_dimension_numbers<[1], [0], [0], [1], [0, 0, 1, 1], [], []>} : vector<16x768xbf16>, vector<768x128xbf16>, vector<16x128xf32> -> vector<16x128xf32>
    %cst_8 = arith.constant 0.000000e+00 : f32
    %10 = vector.broadcast %cst_8 : f32 to vector<16x128xf32>
    %11 = arith.maximumf %9, %10 : vector<16x128xf32>
    %c0_9 = arith.constant 0 : index
    %c0_10 = arith.constant 0 : index
    %12 = vector.load %arg4[%c0_9, %c0_10] : memref<1x128xf32, #tpu.memory_space<vmem>>, vector<1x128xf32>
    "tpu.trace_start"() <{level = 10 : i32, message = "of,tf->ot"}> : () -> ()
    %cst_11 = arith.constant dense<0.000000e+00> : vector<1x16xf32>
    %13 = tpu.matmul %12, %7, %cst_11 {dimension_numbers = #tpu.dot_dimension_numbers<[1], [1], [0], [0], [0, 0, 1, 0], [], []>} : vector<1x128xf32>, vector<16x128xf32>, vector<1x16xf32> -> vector<1x16xf32>
    "tpu.trace_stop"() : () -> ()
    %c0_12 = arith.constant 0 : index
    %c0_13 = arith.constant 0 : index
    %14 = vector.load %arg5[%c0_12, %c0_13] : memref<1x128xf32, #tpu.memory_space<vmem>>, vector<1x128xf32>
    "tpu.trace_start"() <{level = 10 : i32, message = "of,tf->ot"}> : () -> ()
    %cst_14 = arith.constant dense<0.000000e+00> : vector<1x16xf32>
    %15 = tpu.matmul %14, %11, %cst_14 {dimension_numbers = #tpu.dot_dimension_numbers<[1], [1], [0], [0], [0, 0, 1, 0], [], []>} : vector<1x128xf32>, vector<16x128xf32>, vector<1x16xf32> -> vector<1x16xf32>
    "tpu.trace_stop"() : () -> ()
    %16 = arith.addf %13, %15 : vector<1x16xf32>
    %c0_15 = arith.constant 0 : index
    %17 = memref.load %arg6[%c0_15] : memref<1xf32, #tpu.memory_space<smem>>
    %18 = vector.broadcast %17 : f32 to vector<1x16xf32>
    %19 = arith.addf %16, %18 : vector<1x16xf32>
    %20 = arith.negf %19 : vector<1x16xf32>
    %21 = math.exp %20 : vector<1x16xf32>
    %cst_16 = arith.constant 1.000000e+00 : f32
    %22 = vector.broadcast %cst_16 : f32 to vector<1x16xf32>
    %23 = arith.addf %22, %21 : vector<1x16xf32>
    %24 = arith.divf %22, %23 : vector<1x16xf32>
    %25 = vector.shape_cast %24 : vector<1x16xf32> to vector<1x1x16xf32>
    %c0_17 = arith.constant 0 : index
    %c0_18 = arith.constant 0 : index
    %c0_19 = arith.constant 0 : index
    %26 = vector.load %arg7[%c0_17, %c0_18, %c0_19] : memref<1x1x16xf32, #tpu.memory_space<vmem>>, vector<1x1x16xf32>
    tpu.vector_store %arg7[%c0_17, %c0_18, %c0_19], %25 {strides = array<i32>} : memref<1x1x16xf32, #tpu.memory_space<vmem>>, vector<1x1x16xf32>,
    return
  }
  func.func @transform_0(%arg0: i32) -> (i32, i32) {
    %c0_i32 = arith.constant 0 : i32
    %c0_i32_0 = arith.constant 0 : i32
    return %arg0, %c0_i32 : i32, i32
  }
  func.func @transform_1(%arg0: i32) -> (i32, i32) {
    %c0_i32 = arith.constant 0 : i32
    %c0_i32_0 = arith.constant 0 : i32
    %c0_i32_1 = arith.constant 0 : i32
    return %c0_i32, %c0_i32_0 : i32, i32
  }
  func.func @transform_2(%arg0: i32) -> (i32, i32) {
    %c0_i32 = arith.constant 0 : i32
    %c0_i32_0 = arith.constant 0 : i32
    %c0_i32_1 = arith.constant 0 : i32
    return %c0_i32, %c0_i32_0 : i32, i32
  }
  func.func @transform_3(%arg0: i32) -> (i32, i32) {
    %c0_i32 = arith.constant 0 : i32
    %c0_i32_0 = arith.constant 0 : i32
    %c0_i32_1 = arith.constant 0 : i32
    return %c0_i32, %c0_i32_0 : i32, i32
  }
  func.func @transform_4(%arg0: i32) -> (i32, i32) {
    %c0_i32 = arith.constant 0 : i32
    %c0_i32_0 = arith.constant 0 : i32
    %c0_i32_1 = arith.constant 0 : i32
    return %c0_i32, %c0_i32_0 : i32, i32
  }
  func.func @transform_5(%arg0: i32) -> i32 {
    %c0_i32 = arith.constant 0 : i32
    %c0_i32_0 = arith.constant 0 : i32
    return %c0_i32 : i32
  }
  func.func @transform_6(%arg0: i32) -> (i32, i32, i32) {
    %c0_i32 = arith.constant 0 : i32
    %c0_i32_0 = arith.constant 0 : i32
    %c0_i32_1 = arith.constant 0 : i32
    return %arg0, %c0_i32, %c0_i32_0 : i32, i32, i32
  }
}

</mosaic_0001>

<llo_original>
// kernel: tpu_custom_call.1
$region0: #{tpu_custom_call.1}
  #allocation0 [shape = 'u32[]', space=smem, size = 0x4, offset = 0x4, fixed_abs, tag = 'smem constant byte address 0x4 - core index']
  #allocation1 [shape = 'u32[144,128]{1,0:T(1,128)}', space=vmem, size = 0x12000, scoped, tag = 'internal scratch']
  #allocation2 [shape = 'f32[1]{0:T(128)S(6)}', space=smem, size = 0x200, scoped, tag = 'scoped memory for tpu_custom_call.1']
  %s0 = inlined_call_operand.hbm [shape: f32[8,1536], index: 0, kind: input, shape index: {}]
  %s1 = inlined_call_operand.hbm [shape: bf16[768,128], index: 1, kind: input, shape index: {}]
  %s2 = inlined_call_operand.hbm [shape: bf16[768,128], index: 2, kind: input, shape index: {}]
  %s3 = inlined_call_operand.vmem [shape: f32[1,128], index: 3, kind: input, shape index: {}]
  %s4 = inlined_call_operand.vmem [shape: f32[1,128], index: 4, kind: input, shape index: {}]
  %s5 = inlined_call_operand.<no memory space> [shape: f32[1], index: 5, kind: input, shape index: {}]
  %s6 = inlined_call_operand.hbm [shape: f32[1,1,16], index: 6, kind: output, shape index: {}]
  %s7 = sld [smem:[#allocation0]]
  $region46: #{tpu_custom_call.1} parent=0
    _
  %s9 = ssub.s32 1, %s7
  %s10 = scalar_select 0, %s9, %s7
  %11 = sst [smem:[#allocation2]] %s5
  $region1: #{tpu_custom_call.1} parent=0
    #allocation3 [shape = 'u8[98304]{0}', space=vmem, size = 0x18000, scoped, tag = 'input window, operand 0, single buffered']
    #allocation4 [shape = 's32[1]{0}', space=sflag, size = 0x4, scoped, tag = 'scoped memory for tpu_custom_call.1']
    #allocation5 [shape = 's32[1]{0}', space=sflag, size = 0x4, scoped, tag = 'scoped memory for tpu_custom_call.1']
    #allocation6 [shape = 'u8[196608]{0}', space=vmem, size = 0x30000, scoped, tag = 'input window, operand 1, single buffered']
    #allocation7 [shape = 's32[1]{0}', space=sflag, size = 0x4, scoped, tag = 'scoped memory for tpu_custom_call.1']
    #allocation8 [shape = 'u8[196608]{0}', space=vmem, size = 0x30000, scoped, tag = 'input window, operand 2, single buffered']
    #allocation9 [shape = 'u8[512]{0}', space=vmem, size = 0x400, scoped, tag = 'output window, operand 0, single buffered']
    %12 = vsyncpa [#allocation4], 0
    %13 = vsyncpa [#allocation7], 0
    %14 = vsyncpa [#allocation5], 0
    // Predicated region
    $region2: #{tpu_custom_call.1} parent=1 // pred_check
      _
    $region3: #{tpu_custom_call.1} parent=1 // pred_check_branch
      %16 = sbr.rel (0) target = $region5
    $region4: #{tpu_custom_call.1} parent=1 // pred_region
      %s18 = ssub.s32 3072, 1536
      %19 = vsyncadd [#allocation4], %s18
      %s20 = sshll.u32 [#allocation3], 4
      %s21 = int_to_ptr.vmem [resolvable:$true] %s20
      %26 = dma.hbm_to_vmem [thread:$0]  %s0, 1536, %s21, [#allocation4], 1536, 1536, 96
    $region5: #{tpu_custom_call.1} parent=1 // pred_fallthru
      _
    // Predicated region
    $region6: #{tpu_custom_call.1} parent=1 // pred_check
      _
    $region7: #{tpu_custom_call.1} parent=1 // pred_check_branch
      %28 = sbr.rel (0) target = $region9
    $region8: #{tpu_custom_call.1} parent=1 // pred_region
      %s30 = ssub.s32 6144, 6144
      %31 = vsyncadd [#allocation7], %s30
      %s32 = sshll.u32 [#allocation6], 4
      %s33 = int_to_ptr.vmem [resolvable:$true] %s32
      %38 = dma.hbm_to_vmem [thread:$0]  %s1, 6144, %s33, [#allocation7], 64, 64, 4
    $region9: #{tpu_custom_call.1} parent=1 // pred_fallthru
      _
    // Predicated region
    $region10: #{tpu_custom_call.1} parent=1 // pred_check
      _
    $region11: #{tpu_custom_call.1} parent=1 // pred_check_branch
      %40 = sbr.rel (0) target = $region13
    $region12: #{tpu_custom_call.1} parent=1 // pred_region
      %s42 = ssub.s32 6144, 6144
      %43 = vsyncadd [#allocation7], %s42
      %s44 = sshll.u32 [#allocation8], 4
      %s45 = int_to_ptr.vmem [resolvable:$true] %s44
      %50 = dma.hbm_to_vmem [thread:$0]  %s2, 6144, %s45, [#allocation7], 64, 64, 4
    $region13: #{tpu_custom_call.1} parent=1 // pred_fallthru
      _
    // Predicated region
    $region14: #{tpu_custom_call.1} parent=1 // pred_check
      _
    $region15: #{tpu_custom_call.1} parent=1 // pred_check_branch
      %52 = sbr.rel (0) target = $region17
    $region16: #{tpu_custom_call.1} parent=1 // pred_region
      _
    $region17: #{tpu_custom_call.1} parent=1 // pred_fallthru
      _
    // Predicated region
    $region18: #{tpu_custom_call.1} parent=1 // pred_check
      _
    $region19: #{tpu_custom_call.1} parent=1 // pred_check_branch
      %54 = sbr.rel (0) target = $region21
    $region20: #{tpu_custom_call.1} parent=1 // pred_region
      _
    $region21: #{tpu_custom_call.1} parent=1 // pred_fallthru
      _
    // Predicated region
    $region22: #{tpu_custom_call.1} parent=1 // pred_check
      _
    $region23: #{tpu_custom_call.1} parent=1 // pred_check_branch
      %56 = sbr.rel (0) target = $region25
    $region24: #{tpu_custom_call.1} parent=1 // pred_region
      _
    $region25: #{tpu_custom_call.1} parent=1 // pred_fallthru
      _
    // Predicated region
    $region26: #{tpu_custom_call.1} parent=1 // pred_check
      _
    $region27: #{tpu_custom_call.1} parent=1 // pred_check_branch
      %58 = sbr.rel (0) target = $region29
    $region28: #{tpu_custom_call.1} parent=1 // pred_region
      %59 = dma.done [#allocation4], 3072
    $region29: #{tpu_custom_call.1} parent=1 // pred_fallthru
      _
    // Predicated region
    $region30: #{tpu_custom_call.1} parent=1 // pred_check
      _
    $region31: #{tpu_custom_call.1} parent=1 // pred_check_branch
      %61 = sbr.rel (0) target = $region33
    $region32: #{tpu_custom_call.1} parent=1 // pred_region
      %62 = dma.done [#allocation7], 6144
    $region33: #{tpu_custom_call.1} parent=1 // pred_fallthru
      _
    // Predicated region
    $region34: #{tpu_custom_call.1} parent=1 // pred_check
      _
    $region35: #{tpu_custom_call.1} parent=1 // pred_check_branch
      %64 = sbr.rel (0) target = $region37
    $region36: #{tpu_custom_call.1} parent=1 // pred_region
      %65 = dma.done [#allocation7], 6144
    $region37: #{tpu_custom_call.1} parent=1 // pred_fallthru
      _
    %v67 = vld [vmem:[#allocation3] sm:$0xff]
    %v68 = vld [vmem:[#allocation3 + $0x8] sm:$0xff]
    %v69 = vld [vmem:[#allocation3 + $0x10] sm:$0xff]
    %v70 = vld [vmem:[#allocation3 + $0x18] sm:$0xff]
    %v71 = vld [vmem:[#allocation3 + $0x20] sm:$0xff]
    %v72 = vld [vmem:[#allocation3 + $0x28] sm:$0xff]
    %v73 = vld [vmem:[#allocation3 + $0x60] sm:$0xff]
    %v74 = vld [vmem:[#allocation3 + $0x68] sm:$0xff]
    %v75 = vld [vmem:[#allocation3 + $0x70] sm:$0xff]
    %v76 = vld [vmem:[#allocation3 + $0x78] sm:$0xff]
    %v77 = vld [vmem:[#allocation3 + $0x80] sm:$0xff]
    %v78 = vld [vmem:[#allocation3 + $0x88] sm:$0xff]
    %v79 = vpack.c.bf16 %v73, %v67
    %v80 = vpack.c.bf16 %v74, %v68
    %v81 = vpack.c.bf16 %v75, %v69
    %v82 = vpack.c.bf16 %v76, %v70
    %v83 = vpack.c.bf16 %v77, %v71
    %v84 = vpack.c.bf16 %v78, %v72
    %v85 = vld [vmem:[#allocation3 + $0x30] sm:$0xff]
    %v86 = vld [vmem:[#allocation3 + $0x38] sm:$0xff]
    %v87 = vld [vmem:[#allocation3 + $0x40] sm:$0xff]
    %v88 = vld [vmem:[#allocation3 + $0x48] sm:$0xff]
    %v89 = vld [vmem:[#allocation3 + $0x50] sm:$0xff]
    %v90 = vld [vmem:[#allocation3 + $0x58] sm:$0xff]
    %v91 = vld [vmem:[#allocation3 + $0x90] sm:$0xff]
    %v92 = vld [vmem:[#allocation3 + $0x98] sm:$0xff]
    %v93 = vld [vmem:[#allocation3 + $0xa0] sm:$0xff]
    %v94 = vld [vmem:[#allocation3 + $0xa8] sm:$0xff]
    %v95 = vld [vmem:[#allocation3 + $0xb0] sm:$0xff]
    %v96 = vld [vmem:[#allocation3 + $0xb8] sm:$0xff]
    %v97 = vpack.c.bf16 %v91, %v85
    %v98 = vpack.c.bf16 %v92, %v86
    %v99 = vpack.c.bf16 %v93, %v87
    %v100 = vpack.c.bf16 %v94, %v88
    %v101 = vpack.c.bf16 %v95, %v89
    %v102 = vpack.c.bf16 %v96, %v90
    %v103 = vld [vmem:[#allocation6] sm:$0xf]
    %v104 = vld [vmem:[#allocation6 + $0x4] sm:$0xf]
    %v105 = vld [vmem:[#allocation6 + $0x8] sm:$0xf]
    %v106 = vld [vmem:[#allocation6 + $0xc] sm:$0xf]
    %v107 = vld [vmem:[#allocation6 + $0x10] sm:$0xf]
    %v108 = vld [vmem:[#allocation6 + $0x14] sm:$0xf]
    %v109 = vld [vmem:[#allocation6 + $0x18] sm:$0xf]
    %v110 = vld [vmem:[#allocation6 + $0x1c] sm:$0xf]
    %v111 = vld [vmem:[#allocation6 + $0x20] sm:$0xf]
    %v112 = vld [vmem:[#allocation6 + $0x24] sm:$0xf]
    %v113 = vld [vmem:[#allocation6 + $0x28] sm:$0xf]
    %v114 = vld [vmem:[#allocation6 + $0x2c] sm:$0xf]
    %v115 = vld [vmem:[#allocation6 + $0x30] sm:$0xf]
    %v116 = vld [vmem:[#allocation6 + $0x34] sm:$0xf]
    %v117 = vld [vmem:[#allocation6 + $0x38] sm:$0xf]
    %v118 = vld [vmem:[#allocation6 + $0x3c] sm:$0xf]
    %v119 = vld [vmem:[#allocation6 + $0x40] sm:$0xf]
    %v120 = vld [vmem:[#allocation6 + $0x44] sm:$0xf]
    %v121 = vld [vmem:[#allocation6 + $0x48] sm:$0xf]
    %v122 = vld [vmem:[#allocation6 + $0x4c] sm:$0xf]
    %v123 = vld [vmem:[#allocation6 + $0x50] sm:$0xf]
    %v124 = vld [vmem:[#allocation6 + $0x54] sm:$0xf]
    %v125 = vld [vmem:[#allocation6 + $0x58] sm:$0xf]
    %v126 = vld [vmem:[#allocation6 + $0x5c] sm:$0xf]
    %v127 = vld [vmem:[#allocation6 + $0x60] sm:$0xf]
    %v128 = vld [vmem:[#allocation6 + $0x64] sm:$0xf]
    %v129 = vld [vmem:[#allocation6 + $0x68] sm:$0xf]
    %v130 = vld [vmem:[#allocation6 + $0x6c] sm:$0xf]
    %v131 = vld [vmem:[#allocation6 + $0x70] sm:$0xf]
    %v132 = vld [vmem:[#allocation6 + $0x74] sm:$0xf]
    %v133 = vld [vmem:[#allocation6 + $0x78] sm:$0xf]
    %v134 = vld [vmem:[#allocation6 + $0x7c] sm:$0xf]
    %v135 = vld [vmem:[#allocation6 + $0x80] sm:$0xf]
    %v136 = vld [vmem:[#allocation6 + $0x84] sm:$0xf]
    %v137 = vld [vmem:[#allocation6 + $0x88] sm:$0xf]
    %v138 = vld [vmem:[#allocation6 + $0x8c] sm:$0xf]
    %v139 = vld [vmem:[#allocation6 + $0x90] sm:$0xf]
    %v140 = vld [vmem:[#allocation6 + $0x94] sm:$0xf]
    %v141 = vld [vmem:[#allocation6 + $0x98] sm:$0xf]
    %v142 = vld [vmem:[#allocation6 + $0x9c] sm:$0xf]
    %v143 = vld [vmem:[#allocation6 + $0xa0] sm:$0xf]
    %v144 = vld [vmem:[#allocation6 + $0xa4] sm:$0xf]
    %v145 = vld [vmem:[#allocation6 + $0xa8] sm:$0xf]
    %v146 = vld [vmem:[#allocation6 + $0xac] sm:$0xf]
    %v147 = vld [vmem:[#allocation6 + $0xb0] sm:$0xf]
    %v148 = vld [vmem:[#allocation6 + $0xb4] sm:$0xf]
    %v149 = vld [vmem:[#allocation6 + $0xb8] sm:$0xf]
    %v150 = vld [vmem:[#allocation6 + $0xbc] sm:$0xf]
    %v151 = vld [vmem:[#allocation6 + $0xc0] sm:$0xf]
    %v152 = vld [vmem:[#allocation6 + $0xc4] sm:$0xf]
    %v153 = vld [vmem:[#allocation6 + $0xc8] sm:$0xf]
    %v154 = vld [vmem:[#allocation6 + $0xcc] sm:$0xf]
    %v155 = vld [vmem:[#allocation6 + $0xd0] sm:$0xf]
    %v156 = vld [vmem:[#allocation6 + $0xd4] sm:$0xf]
    %v157 = vld [vmem:[#allocation6 + $0xd8] sm:$0xf]
    %v158 = vld [vmem:[#allocation6 + $0xdc] sm:$0xf]
    %v159 = vld [vmem:[#allocation6 + $0xe0] sm:$0xf]
    %v160 = vld [vmem:[#allocation6 + $0xe4] sm:$0xf]
    %v161 = vld [vmem:[#allocation6 + $0xe8] sm:$0xf]
    %v162 = vld [vmem:[#allocation6 + $0xec] sm:$0xf]
    %v163 = vld [vmem:[#allocation6 + $0xf0] sm:$0xf]
    %v164 = vld [vmem:[#allocation6 + $0xf4] sm:$0xf]
    %v165 = vld [vmem:[#allocation6 + $0xf8] sm:$0xf]
    %v166 = vld [vmem:[#allocation6 + $0xfc] sm:$0xf]
    %v167 = vld [vmem:[#allocation6 + $0x100] sm:$0xf]
    %v168 = vld [vmem:[#allocation6 + $0x104] sm:$0xf]
    %v169 = vld [vmem:[#allocation6 + $0x108] sm:$0xf]
    %v170 = vld [vmem:[#allocation6 + $0x10c] sm:$0xf]
    %v171 = vld [vmem:[#allocation6 + $0x110] sm:$0xf]
    %v172 = vld [vmem:[#allocation6 + $0x114] sm:$0xf]
    %v173 = vld [vmem:[#allocation6 + $0x118] sm:$0xf]
    %v174 = vld [vmem:[#allocation6 + $0x11c] sm:$0xf]
    %v175 = vld [vmem:[#allocation6 + $0x120] sm:$0xf]
    %v176 = vld [vmem:[#allocation6 + $0x124] sm:$0xf]
    %v177 = vld [vmem:[#allocation6 + $0x128] sm:$0xf]
    %v178 = vld [vmem:[#allocation6 + $0x12c] sm:$0xf]
    %v179 = vld [vmem:[#allocation6 + $0x130] sm:$0xf]
    %v180 = vld [vmem:[#allocation6 + $0x134] sm:$0xf]
    %v181 = vld [vmem:[#allocation6 + $0x138] sm:$0xf]
    %v182 = vld [vmem:[#allocation6 + $0x13c] sm:$0xf]
    %v183 = vld [vmem:[#allocation6 + $0x140] sm:$0xf]
    %v184 = vld [vmem:[#allocation6 + $0x144] sm:$0xf]
    %v185 = vld [vmem:[#allocation6 + $0x148] sm:$0xf]
    %v186 = vld [vmem:[#allocation6 + $0x14c] sm:$0xf]
    %v187 = vld [vmem:[#allocation6 + $0x150] sm:$0xf]
    %v188 = vld [vmem:[#allocation6 + $0x154] sm:$0xf]
    %v189 = vld [vmem:[#allocation6 + $0x158] sm:$0xf]
    %v190 = vld [vmem:[#allocation6 + $0x15c] sm:$0xf]
    %v191 = vld [vmem:[#allocation6 + $0x160] sm:$0xf]
    %v192 = vld [vmem:[#allocation6 + $0x164] sm:$0xf]
    %v193 = vld [vmem:[#allocation6 + $0x168] sm:$0xf]
    %v194 = vld [vmem:[#allocation6 + $0x16c] sm:$0xf]
    %v195 = vld [vmem:[#allocation6 + $0x170] sm:$0xf]
    %v196 = vld [vmem:[#allocation6 + $0x174] sm:$0xf]
    %v197 = vld [vmem:[#allocation6 + $0x178] sm:$0xf]
    %v198 = vld [vmem:[#allocation6 + $0x17c] sm:$0xf]
    %v295 = vunpack.c.l.b16 %v103
    %v296 = vunpack.c.l.b16 %v104
    %v297 = vunpack.c.l.b16 %v105
    %v298 = vunpack.c.l.b16 %v106
    %v299 = vunpack.c.l.b16 %v107
    %v300 = vunpack.c.l.b16 %v108
    %v301 = vunpack.c.l.b16 %v109
    %v302 = vunpack.c.l.b16 %v110
    %v303 = vunpack.c.l.b16 %v111
    %v304 = vunpack.c.l.b16 %v112
    %v305 = vunpack.c.l.b16 %v113
    %v306 = vunpack.c.l.b16 %v114
    %v307 = vunpack.c.l.b16 %v115
    %v308 = vunpack.c.l.b16 %v116
    %v309 = vunpack.c.l.b16 %v117
    %v310 = vunpack.c.l.b16 %v118
    %v311 = vunpack.c.l.b16 %v119
    %v312 = vunpack.c.l.b16 %v120
    %v313 = vunpack.c.l.b16 %v121
    %v314 = vunpack.c.l.b16 %v122
    %v315 = vunpack.c.l.b16 %v123
    %v316 = vunpack.c.l.b16 %v124
    %v317 = vunpack.c.l.b16 %v125
    %v318 = vunpack.c.l.b16 %v126
    %v319 = vunpack.c.l.b16 %v127
    %v320 = vunpack.c.l.b16 %v128
    %v321 = vunpack.c.l.b16 %v129
    %v322 = vunpack.c.l.b16 %v130
    %v323 = vunpack.c.l.b16 %v131
    %v324 = vunpack.c.l.b16 %v132
    %v325 = vunpack.c.l.b16 %v133
    %v326 = vunpack.c.l.b16 %v134
    %v327 = vunpack.c.l.b16 %v135
    %v328 = vunpack.c.l.b16 %v136
    %v329 = vunpack.c.l.b16 %v137
    %v330 = vunpack.c.l.b16 %v138
    %v331 = vunpack.c.l.b16 %v139
    %v332 = vunpack.c.l.b16 %v140
    %v333 = vunpack.c.l.b16 %v141
    %v334 = vunpack.c.l.b16 %v142
    %v335 = vunpack.c.l.b16 %v143
    %v336 = vunpack.c.l.b16 %v144
    %v337 = vunpack.c.l.b16 %v145
    %v338 = vunpack.c.l.b16 %v146
    %v339 = vunpack.c.l.b16 %v147
    %v340 = vunpack.c.l.b16 %v148
    %v341 = vunpack.c.l.b16 %v149
    %v342 = vunpack.c.l.b16 %v150
    %v343 = vunpack.c.l.b16 %v151
    %v344 = vunpack.c.l.b16 %v152
    %v345 = vunpack.c.l.b16 %v153
    %v346 = vunpack.c.l.b16 %v154
    %v347 = vunpack.c.l.b16 %v155
    %v348 = vunpack.c.l.b16 %v156
    %v349 = vunpack.c.l.b16 %v157
    %v350 = vunpack.c.l.b16 %v158
    %v351 = vunpack.c.l.b16 %v159
    %v352 = vunpack.c.l.b16 %v160
    %v353 = vunpack.c.l.b16 %v161
    %v354 = vunpack.c.l.b16 %v162
    %v355 = vunpack.c.l.b16 %v163
    %v356 = vunpack.c.l.b16 %v164
    %v357 = vunpack.c.l.b16 %v165
    %v358 = vunpack.c.l.b16 %v166
    %v359 = vunpack.c.l.b16 %v167
    %v360 = vunpack.c.l.b16 %v168
    %v361 = vunpack.c.l.b16 %v169
    %v362 = vunpack.c.l.b16 %v170
    %v363 = vunpack.c.l.b16 %v171
    %v364 = vunpack.c.l.b16 %v172
    %v365 = vunpack.c.l.b16 %v173
    %v366 = vunpack.c.l.b16 %v174
    %v367 = vunpack.c.l.b16 %v175
    %v368 = vunpack.c.l.b16 %v176
    %v369 = vunpack.c.l.b16 %v177
    %v370 = vunpack.c.l.b16 %v178
    %v371 = vunpack.c.l.b16 %v179
    %v372 = vunpack.c.l.b16 %v180
    %v373 = vunpack.c.l.b16 %v181
    %v374 = vunpack.c.l.b16 %v182
    %v375 = vunpack.c.l.b16 %v183
    %v376 = vunpack.c.l.b16 %v184
    %v377 = vunpack.c.l.b16 %v185
    %v378 = vunpack.c.l.b16 %v186
    %v379 = vunpack.c.l.b16 %v187
    %v380 = vunpack.c.l.b16 %v188
    %v381 = vunpack.c.l.b16 %v189
    %v382 = vunpack.c.l.b16 %v190
    %v383 = vunpack.c.l.b16 %v191
    %v384 = vunpack.c.l.b16 %v192
    %v385 = vunpack.c.l.b16 %v193
    %v386 = vunpack.c.l.b16 %v194
    %v387 = vunpack.c.l.b16 %v195
    %v388 = vunpack.c.l.b16 %v196
    %v389 = vunpack.c.l.b16 %v197
    %v390 = vunpack.c.l.b16 %v198
    %v391 = vpack.c.b16 %v296, %v295
    %v392 = vpack.c.b16 %v298, %v297
    %v393 = vpack.c.b16 %v300, %v299
    %v394 = vpack.c.b16 %v302, %v301
    %v395 = vpack.c.b16 %v304, %v303
    %v396 = vpack.c.b16 %v306, %v305
    %v397 = vpack.c.b16 %v308, %v307
    %v398 = vpack.c.b16 %v310, %v309
    %v399 = vpack.c.b16 %v312, %v311
    %v400 = vpack.c.b16 %v314, %v313
    %v401 = vpack.c.b16 %v316, %v315
    %v402 = vpack.c.b16 %v318, %v317
    %v403 = vpack.c.b16 %v320, %v319
    %v404 = vpack.c.b16 %v322, %v321
    %v405 = vpack.c.b16 %v324, %v323
    %v406 = vpack.c.b16 %v326, %v325
    %v407 = vpack.c.b16 %v328, %v327
    %v408 = vpack.c.b16 %v330, %v329
    %v409 = vpack.c.b16 %v332, %v331
    %v410 = vpack.c.b16 %v334, %v333
    %v411 = vpack.c.b16 %v336, %v335
    %v412 = vpack.c.b16 %v338, %v337
    %v413 = vpack.c.b16 %v340, %v339
    %v414 = vpack.c.b16 %v342, %v341
    %v415 = vpack.c.b16 %v344, %v343
    %v416 = vpack.c.b16 %v346, %v345
    %v417 = vpack.c.b16 %v348, %v347
    %v418 = vpack.c.b16 %v350, %v349
    %v419 = vpack.c.b16 %v352, %v351
    %v420 = vpack.c.b16 %v354, %v353
    %v421 = vpack.c.b16 %v356, %v355
    %v422 = vpack.c.b16 %v358, %v357
    %v423 = vpack.c.b16 %v360, %v359
    %v424 = vpack.c.b16 %v362, %v361
    %v425 = vpack.c.b16 %v364, %v363
    %v426 = vpack.c.b16 %v366, %v365
    %v427 = vpack.c.b16 %v368, %v367
    %v428 = vpack.c.b16 %v370, %v369
    %v429 = vpack.c.b16 %v372, %v371
    %v430 = vpack.c.b16 %v374, %v373
    %v431 = vpack.c.b16 %v376, %v375
    %v432 = vpack.c.b16 %v378, %v377
    %v433 = vpack.c.b16 %v380, %v379
    %v434 = vpack.c.b16 %v382, %v381
    %v435 = vpack.c.b16 %v384, %v383
    %v436 = vpack.c.b16 %v386, %v385
    %v437 = vpack.c.b16 %v388, %v387
    %v438 = vpack.c.b16 %v390, %v389
    %487 = vmatprep.subr.bf16.mxu0 0
    %488 = vmatpush1.bf16.msra.mxu0 %v391
    %489 = vmatprep.subr.bf16.mxu0 0
    %490 = vmatpush1.bf16.msra.mxu0 %v392
    %491 = vmatprep.subr.bf16.mxu0 0
    %492 = vmatpush1.bf16.msra.mxu0 %v393
    %493 = vmatprep.subr.bf16.mxu0 0
    %494 = vmatpush1.bf16.msra.mxu0 %v394
    %495 = vmatprep.subr.bf16.mxu0 0
    %496 = vmatpush1.bf16.msra.mxu0 %v395
    %497 = vmatprep.subr.bf16.mxu0 0
    %498 = vmatpush1.bf16.msra.mxu0 %v396
    %499 = vmatprep.subr.bf16.mxu0 0
    %500 = vmatpush1.bf16.msra.mxu0 %v397
    %501 = vmatprep.subr.bf16.mxu0 0
    %502 = vmatpush1.bf16.msra.mxu0 %v398
    %503 = vmatprep.subr.bf16.mxu0 0
    %504 = vmatpush1.bf16.msra.mxu0 %v399
    %505 = vmatprep.subr.bf16.mxu0 0
    %506 = vmatpush1.bf16.msra.mxu0 %v400
    %507 = vmatprep.subr.bf16.mxu0 0
    %508 = vmatpush1.bf16.msra.mxu0 %v401
    %509 = vmatprep.subr.bf16.mxu0 0
    %510 = vmatpush1.bf16.msra.mxu0 %v402
    %511 = vmatprep.subr.bf16.mxu0 0
    %512 = vmatpush1.bf16.msra.mxu0 %v403
    %513 = vmatprep.subr.bf16.mxu0 0
    %514 = vmatpush1.bf16.msra.mxu0 %v404
    %515 = vmatprep.subr.bf16.mxu0 0
    %516 = vmatpush1.bf16.msra.mxu0 %v405
    %517 = vmatprep.subr.bf16.mxu0 0
    %518 = vmatpush1.bf16.msra.mxu0 %v406
    %519 = vmatprep.mubr.bf16.mxu0 %v80
    %520 = vmatmul.mubr.bf16.gmra.mrb[0].mxu0 %v79
    %v521 = vpop.f32.mrb[0].mxu0
    %v522 = vadd.f32 0.0, %v521
    %v523 = vpop.f32.mrb[0].mxu0
    %v524 = vpop.f32.mrb[0].mxu0
    %v525 = vadd.f32 0.0, %v524
    %v526 = vpop.f32.mrb[0].mxu0
    %527 = vdwg.mxu0
    %528 = vmatprep.subr.bf16.mxu0 0
    %529 = vmatpush1.bf16.msra.mxu0 %v407
    %530 = vmatprep.subr.bf16.mxu0 0
    %531 = vmatpush1.bf16.msra.mxu0 %v408
    %532 = vmatprep.subr.bf16.mxu0 0
    %533 = vmatpush1.bf16.msra.mxu0 %v409
    %534 = vmatprep.subr.bf16.mxu0 0
    %535 = vmatpush1.bf16.msra.mxu0 %v410
    %536 = vmatprep.subr.bf16.mxu0 0
    %537 = vmatpush1.bf16.msra.mxu0 %v411
    %538 = vmatprep.subr.bf16.mxu0 0
    %539 = vmatpush1.bf16.msra.mxu0 %v412
    %540 = vmatprep.subr.bf16.mxu0 0
    %541 = vmatpush1.bf16.msra.mxu0 %v413
    %542 = vmatprep.subr.bf16.mxu0 0
    %543 = vmatpush1.bf16.msra.mxu0 %v414
    %544 = vmatprep.subr.bf16.mxu0 0
    %545 = vmatpush1.bf16.msra.mxu0 %v415
    %546 = vmatprep.subr.bf16.mxu0 0
    %547 = vmatpush1.bf16.msra.mxu0 %v416
    %548 = vmatprep.subr.bf16.mxu0 0
    %549 = vmatpush1.bf16.msra.mxu0 %v417
    %550 = vmatprep.subr.bf16.mxu0 0
    %551 = vmatpush1.bf16.msra.mxu0 %v418
    %552 = vmatprep.subr.bf16.mxu0 0
    %553 = vmatpush1.bf16.msra.mxu0 %v419
    %554 = vmatprep.subr.bf16.mxu0 0
    %555 = vmatpush1.bf16.msra.mxu0 %v420
    %556 = vmatprep.subr.bf16.mxu0 0
    %557 = vmatpush1.bf16.msra.mxu0 %v421
    %558 = vmatprep.subr.bf16.mxu0 0
    %559 = vmatpush1.bf16.msra.mxu0 %v422
    %560 = vmatprep.mubr.bf16.mxu0 %v82
    %561 = vmatmul.mubr.bf16.gmra.mrb[0].mxu0 %v81
    %v562 = vpop.f32.mrb[0].mxu0
    %v563 = vadd.f32 %v522, %v562
    %v564 = vpop.f32.mrb[0].mxu0
    %v565 = vpop.f32.mrb[0].mxu0
    %v566 = vadd.f32 %v525, %v565
    %v567 = vpop.f32.mrb[0].mxu0
    %568 = vdwg.mxu0
    %569 = vmatprep.subr.bf16.mxu0 0
    %570 = vmatpush1.bf16.msra.mxu0 %v423
    %571 = vmatprep.subr.bf16.mxu0 0
    %572 = vmatpush1.bf16.msra.mxu0 %v424
    %573 = vmatprep.subr.bf16.mxu0 0
    %574 = vmatpush1.bf16.msra.mxu0 %v425
    %575 = vmatprep.subr.bf16.mxu0 0
    %576 = vmatpush1.bf16.msra.mxu0 %v426
    %577 = vmatprep.subr.bf16.mxu0 0
    %578 = vmatpush1.bf16.msra.mxu0 %v427
    %579 = vmatprep.subr.bf16.mxu0 0
    %580 = vmatpush1.bf16.msra.mxu0 %v428
    %581 = vmatprep.subr.bf16.mxu0 0
    %582 = vmatpush1.bf16.msra.mxu0 %v429
    %583 = vmatprep.subr.bf16.mxu0 0
    %584 = vmatpush1.bf16.msra.mxu0 %v430
    %585 = vmatprep.subr.bf16.mxu0 0
    %586 = vmatpush1.bf16.msra.mxu0 %v431
    %587 = vmatprep.subr.bf16.mxu0 0
    %588 = vmatpush1.bf16.msra.mxu0 %v432
    %589 = vmatprep.subr.bf16.mxu0 0
    %590 = vmatpush1.bf16.msra.mxu0 %v433
    %591 = vmatprep.subr.bf16.mxu0 0
    %592 = vmatpush1.bf16.msra.mxu0 %v434
    %593 = vmatprep.subr.bf16.mxu0 0
    %594 = vmatpush1.bf16.msra.mxu0 %v435
    %595 = vmatprep.subr.bf16.mxu0 0
    %596 = vmatpush1.bf16.msra.mxu0 %v436
    %597 = vmatprep.subr.bf16.mxu0 0
    %598 = vmatpush1.bf16.msra.mxu0 %v437
    %599 = vmatprep.subr.bf16.mxu0 0
    %600 = vmatpush1.bf16.msra.mxu0 %v438
    %601 = vmatprep.mubr.bf16.mxu0 %v84
    %602 = vmatmul.mubr.bf16.gmra.mrb[0].mxu0 %v83
    %v603 = vpop.f32.mrb[0].mxu0
    %v604 = vadd.f32 %v563, %v603
    %v605 = vpop.f32.mrb[0].mxu0
    %v606 = vpop.f32.mrb[0].mxu0
    %v607 = vadd.f32 %v566, %v606
    %v608 = vpop.f32.mrb[0].mxu0
    %609 = vdwg.mxu0
    %v610 = vmax.f32 %v604, 0.0
    %v611 = vmax.f32 %v607, 0.0
    %v612 = vld [vmem:[#allocation8] sm:$0xf]
    %v613 = vld [vmem:[#allocation8 + $0x4] sm:$0xf]
    %v614 = vld [vmem:[#allocation8 + $0x8] sm:$0xf]
    %v615 = vld [vmem:[#allocation8 + $0xc] sm:$0xf]
    %v616 = vld [vmem:[#allocation8 + $0x10] sm:$0xf]
    %v617 = vld [vmem:[#allocation8 + $0x14] sm:$0xf]
    %v618 = vld [vmem:[#allocation8 + $0x18] sm:$0xf]
    %v619 = vld [vmem:[#allocation8 + $0x1c] sm:$0xf]
    %v620 = vld [vmem:[#allocation8 + $0x20] sm:$0xf]
    %v621 = vld [vmem:[#allocation8 + $0x24] sm:$0xf]
    %v622 = vld [vmem:[#allocation8 + $0x28] sm:$0xf]
    %v623 = vld [vmem:[#allocation8 + $0x2c] sm:$0xf]
    %v624 = vld [vmem:[#allocation8 + $0x30] sm:$0xf]
    %v625 = vld [vmem:[#allocation8 + $0x34] sm:$0xf]
    %v626 = vld [vmem:[#allocation8 + $0x38] sm:$0xf]
    %v627 = vld [vmem:[#allocation8 + $0x3c] sm:$0xf]
    %v628 = vld [vmem:[#allocation8 + $0x40] sm:$0xf]
    %v629 = vld [vmem:[#allocation8 + $0x44] sm:$0xf]
    %v630 = vld [vmem:[#allocation8 + $0x48] sm:$0xf]
    %v631 = vld [vmem:[#allocation8 + $0x4c] sm:$0xf]
    %v632 = vld [vmem:[#allocation8 + $0x50] sm:$0xf]
    %v633 = vld [vmem:[#allocation8 + $0x54] sm:$0xf]
    %v634 = vld [vmem:[#allocation8 + $0x58] sm:$0xf]
    %v635 = vld [vmem:[#allocation8 + $0x5c] sm:$0xf]
    %v636 = vld [vmem:[#allocation8 + $0x60] sm:$0xf]
    %v637 = vld [vmem:[#allocation8 + $0x64] sm:$0xf]
    %v638 = vld [vmem:[#allocation8 + $0x68] sm:$0xf]
    %v639 = vld [vmem:[#allocation8 + $0x6c] sm:$0xf]
    %v640 = vld [vmem:[#allocation8 + $0x70] sm:$0xf]
    %v641 = vld [vmem:[#allocation8 + $0x74] sm:$0xf]
    %v642 = vld [vmem:[#allocation8 + $0x78] sm:$0xf]
    %v643 = vld [vmem:[#allocation8 + $0x7c] sm:$0xf]
    %v644 = vld [vmem:[#allocation8 + $0x80] sm:$0xf]
    %v645 = vld [vmem:[#allocation8 + $0x84] sm:$0xf]
    %v646 = vld [vmem:[#allocation8 + $0x88] sm:$0xf]
    %v647 = vld [vmem:[#allocation8 + $0x8c] sm:$0xf]
    %v648 = vld [vmem:[#allocation8 + $0x90] sm:$0xf]
    %v649 = vld [vmem:[#allocation8 + $0x94] sm:$0xf]
    %v650 = vld [vmem:[#allocation8 + $0x98] sm:$0xf]
    %v651 = vld [vmem:[#allocation8 + $0x9c] sm:$0xf]
    %v652 = vld [vmem:[#allocation8 + $0xa0] sm:$0xf]
    %v653 = vld [vmem:[#allocation8 + $0xa4] sm:$0xf]
    %v654 = vld [vmem:[#allocation8 + $0xa8] sm:$0xf]
    %v655 = vld [vmem:[#allocation8 + $0xac] sm:$0xf]
    %v656 = vld [vmem:[#allocation8 + $0xb0] sm:$0xf]
    %v657 = vld [vmem:[#allocation8 + $0xb4] sm:$0xf]
    %v658 = vld [vmem:[#allocation8 + $0xb8] sm:$0xf]
    %v659 = vld [vmem:[#allocation8 + $0xbc] sm:$0xf]
    %v660 = vld [vmem:[#allocation8 + $0xc0] sm:$0xf]
    %v661 = vld [vmem:[#allocation8 + $0xc4] sm:$0xf]
    %v662 = vld [vmem:[#allocation8 + $0xc8] sm:$0xf]
    %v663 = vld [vmem:[#allocation8 + $0xcc] sm:$0xf]
    %v664 = vld [vmem:[#allocation8 + $0xd0] sm:$0xf]
    %v665 = vld [vmem:[#allocation8 + $0xd4] sm:$0xf]
    %v666 = vld [vmem:[#allocation8 + $0xd8] sm:$0xf]
    %v667 = vld [vmem:[#allocation8 + $0xdc] sm:$0xf]
    %v668 = vld [vmem:[#allocation8 + $0xe0] sm:$0xf]
    %v669 = vld [vmem:[#allocation8 + $0xe4] sm:$0xf]
    %v670 = vld [vmem:[#allocation8 + $0xe8] sm:$0xf]
    %v671 = vld [vmem:[#allocation8 + $0xec] sm:$0xf]
    %v672 = vld [vmem:[#allocation8 + $0xf0] sm:$0xf]
    %v673 = vld [vmem:[#allocation8 + $0xf4] sm:$0xf]
    %v674 = vld [vmem:[#allocation8 + $0xf8] sm:$0xf]
    %v675 = vld [vmem:[#allocation8 + $0xfc] sm:$0xf]
    %v676 = vld [vmem:[#allocation8 + $0x100] sm:$0xf]
    %v677 = vld [vmem:[#allocation8 + $0x104] sm:$0xf]
    %v678 = vld [vmem:[#allocation8 + $0x108] sm:$0xf]
    %v679 = vld [vmem:[#allocation8 + $0x10c] sm:$0xf]
    %v680 = vld [vmem:[#allocation8 + $0x110] sm:$0xf]
    %v681 = vld [vmem:[#allocation8 + $0x114] sm:$0xf]
    %v682 = vld [vmem:[#allocation8 + $0x118] sm:$0xf]
    %v683 = vld [vmem:[#allocation8 + $0x11c] sm:$0xf]
    %v684 = vld [vmem:[#allocation8 + $0x120] sm:$0xf]
    %v685 = vld [vmem:[#allocation8 + $0x124] sm:$0xf]
    %v686 = vld [vmem:[#allocation8 + $0x128] sm:$0xf]
    %v687 = vld [vmem:[#allocation8 + $0x12c] sm:$0xf]
    %v688 = vld [vmem:[#allocation8 + $0x130] sm:$0xf]
    %v689 = vld [vmem:[#allocation8 + $0x134] sm:$0xf]
    %v690 = vld [vmem:[#allocation8 + $0x138] sm:$0xf]
    %v691 = vld [vmem:[#allocation8 + $0x13c] sm:$0xf]
    %v692 = vld [vmem:[#allocation8 + $0x140] sm:$0xf]
    %v693 = vld [vmem:[#allocation8 + $0x144] sm:$0xf]
    %v694 = vld [vmem:[#allocation8 + $0x148] sm:$0xf]
    %v695 = vld [vmem:[#allocation8 + $0x14c] sm:$0xf]
    %v696 = vld [vmem:[#allocation8 + $0x150] sm:$0xf]
    %v697 = vld [vmem:[#allocation8 + $0x154] sm:$0xf]
    %v698 = vld [vmem:[#allocation8 + $0x158] sm:$0xf]
    %v699 = vld [vmem:[#allocation8 + $0x15c] sm:$0xf]
    %v700 = vld [vmem:[#allocation8 + $0x160] sm:$0xf]
    %v701 = vld [vmem:[#allocation8 + $0x164] sm:$0xf]
    %v702 = vld [vmem:[#allocation8 + $0x168] sm:$0xf]
    %v703 = vld [vmem:[#allocation8 + $0x16c] sm:$0xf]
    %v704 = vld [vmem:[#allocation8 + $0x170] sm:$0xf]
    %v705 = vld [vmem:[#allocation8 + $0x174] sm:$0xf]
    %v706 = vld [vmem:[#allocation8 + $0x178] sm:$0xf]
    %v707 = vld [vmem:[#allocation8 + $0x17c] sm:$0xf]
    %v804 = vunpack.c.l.b16 %v612
    %v805 = vunpack.c.l.b16 %v613
    %v806 = vunpack.c.l.b16 %v614
    %v807 = vunpack.c.l.b16 %v615
    %v808 = vunpack.c.l.b16 %v616
    %v809 = vunpack.c.l.b16 %v617
    %v810 = vunpack.c.l.b16 %v618
    %v811 = vunpack.c.l.b16 %v619
    %v812 = vunpack.c.l.b16 %v620
    %v813 = vunpack.c.l.b16 %v621
    %v814 = vunpack.c.l.b16 %v622
    %v815 = vunpack.c.l.b16 %v623
    %v816 = vunpack.c.l.b16 %v624
    %v817 = vunpack.c.l.b16 %v625
    %v818 = vunpack.c.l.b16 %v626
    %v819 = vunpack.c.l.b16 %v627
    %v820 = vunpack.c.l.b16 %v628
    %v821 = vunpack.c.l.b16 %v629
    %v822 = vunpack.c.l.b16 %v630
    %v823 = vunpack.c.l.b16 %v631
    %v824 = vunpack.c.l.b16 %v632
    %v825 = vunpack.c.l.b16 %v633
    %v826 = vunpack.c.l.b16 %v634
    %v827 = vunpack.c.l.b16 %v635
    %v828 = vunpack.c.l.b16 %v636
    %v829 = vunpack.c.l.b16 %v637
    %v830 = vunpack.c.l.b16 %v638
    %v831 = vunpack.c.l.b16 %v639
    %v832 = vunpack.c.l.b16 %v640
    %v833 = vunpack.c.l.b16 %v641
    %v834 = vunpack.c.l.b16 %v642
    %v835 = vunpack.c.l.b16 %v643
    %v836 = vunpack.c.l.b16 %v644
    %v837 = vunpack.c.l.b16 %v645
    %v838 = vunpack.c.l.b16 %v646
    %v839 = vunpack.c.l.b16 %v647
    %v840 = vunpack.c.l.b16 %v648
    %v841 = vunpack.c.l.b16 %v649
    %v842 = vunpack.c.l.b16 %v650
    %v843 = vunpack.c.l.b16 %v651
    %v844 = vunpack.c.l.b16 %v652
    %v845 = vunpack.c.l.b16 %v653
    %v846 = vunpack.c.l.b16 %v654
    %v847 = vunpack.c.l.b16 %v655
    %v848 = vunpack.c.l.b16 %v656
    %v849 = vunpack.c.l.b16 %v657
    %v850 = vunpack.c.l.b16 %v658
    %v851 = vunpack.c.l.b16 %v659
    %v852 = vunpack.c.l.b16 %v660
    %v853 = vunpack.c.l.b16 %v661
    %v854 = vunpack.c.l.b16 %v662
    %v855 = vunpack.c.l.b16 %v663
    %v856 = vunpack.c.l.b16 %v664
    %v857 = vunpack.c.l.b16 %v665
    %v858 = vunpack.c.l.b16 %v666
    %v859 = vunpack.c.l.b16 %v667
    %v860 = vunpack.c.l.b16 %v668
    %v861 = vunpack.c.l.b16 %v669
    %v862 = vunpack.c.l.b16 %v670
    %v863 = vunpack.c.l.b16 %v671
    %v864 = vunpack.c.l.b16 %v672
    %v865 = vunpack.c.l.b16 %v673
    %v866 = vunpack.c.l.b16 %v674
    %v867 = vunpack.c.l.b16 %v675
    %v868 = vunpack.c.l.b16 %v676
    %v869 = vunpack.c.l.b16 %v677
    %v870 = vunpack.c.l.b16 %v678
    %v871 = vunpack.c.l.b16 %v679
    %v872 = vunpack.c.l.b16 %v680
    %v873 = vunpack.c.l.b16 %v681
    %v874 = vunpack.c.l.b16 %v682
    %v875 = vunpack.c.l.b16 %v683
    %v876 = vunpack.c.l.b16 %v684
    %v877 = vunpack.c.l.b16 %v685
    %v878 = vunpack.c.l.b16 %v686
    %v879 = vunpack.c.l.b16 %v687
    %v880 = vunpack.c.l.b16 %v688
    %v881 = vunpack.c.l.b16 %v689
    %v882 = vunpack.c.l.b16 %v690
    %v883 = vunpack.c.l.b16 %v691
    %v884 = vunpack.c.l.b16 %v692
    %v885 = vunpack.c.l.b16 %v693
    %v886 = vunpack.c.l.b16 %v694
    %v887 = vunpack.c.l.b16 %v695
    %v888 = vunpack.c.l.b16 %v696
    %v889 = vunpack.c.l.b16 %v697
    %v890 = vunpack.c.l.b16 %v698
    %v891 = vunpack.c.l.b16 %v699
    %v892 = vunpack.c.l.b16 %v700
    %v893 = vunpack.c.l.b16 %v701
    %v894 = vunpack.c.l.b16 %v702
    %v895 = vunpack.c.l.b16 %v703
    %v896 = vunpack.c.l.b16 %v704
    %v897 = vunpack.c.l.b16 %v705
    %v898 = vunpack.c.l.b16 %v706
    %v899 = vunpack.c.l.b16 %v707
    %v900 = vpack.c.b16 %v805, %v804
    %v901 = vpack.c.b16 %v807, %v806
    %v902 = vpack.c.b16 %v809, %v808
    %v903 = vpack.c.b16 %v811, %v810
    %v904 = vpack.c.b16 %v813, %v812
    %v905 = vpack.c.b16 %v815, %v814
    %v906 = vpack.c.b16 %v817, %v816
    %v907 = vpack.c.b16 %v819, %v818
    %v908 = vpack.c.b16 %v821, %v820
    %v909 = vpack.c.b16 %v823, %v822
    %v910 = vpack.c.b16 %v825, %v824
    %v911 = vpack.c.b16 %v827, %v826
    %v912 = vpack.c.b16 %v829, %v828
    %v913 = vpack.c.b16 %v831, %v830
    %v914 = vpack.c.b16 %v833, %v832
    %v915 = vpack.c.b16 %v835, %v834
    %v916 = vpack.c.b16 %v837, %v836
    %v917 = vpack.c.b16 %v839, %v838
    %v918 = vpack.c.b16 %v841, %v840
    %v919 = vpack.c.b16 %v843, %v842
    %v920 = vpack.c.b16 %v845, %v844
    %v921 = vpack.c.b16 %v847, %v846
    %v922 = vpack.c.b16 %v849, %v848
    %v923 = vpack.c.b16 %v851, %v850
    %v924 = vpack.c.b16 %v853, %v852
    %v925 = vpack.c.b16 %v855, %v854
    %v926 = vpack.c.b16 %v857, %v856
    %v927 = vpack.c.b16 %v859, %v858
    %v928 = vpack.c.b16 %v861, %v860
    %v929 = vpack.c.b16 %v863, %v862
    %v930 = vpack.c.b16 %v865, %v864
    %v931 = vpack.c.b16 %v867, %v866
    %v932 = vpack.c.b16 %v869, %v868
    %v933 = vpack.c.b16 %v871, %v870
    %v934 = vpack.c.b16 %v873, %v872
    %v935 = vpack.c.b16 %v875, %v874
    %v936 = vpack.c.b16 %v877, %v876
    %v937 = vpack.c.b16 %v879, %v878
    %v938 = vpack.c.b16 %v881, %v880
    %v939 = vpack.c.b16 %v883, %v882
    %v940 = vpack.c.b16 %v885, %v884
    %v941 = vpack.c.b16 %v887, %v886
    %v942 = vpack.c.b16 %v889, %v888
    %v943 = vpack.c.b16 %v891, %v890
    %v944 = vpack.c.b16 %v893, %v892
    %v945 = vpack.c.b16 %v895, %v894
    %v946 = vpack.c.b16 %v897, %v896
    %v947 = vpack.c.b16 %v899, %v898
    %996 = vmatprep.subr.bf16.mxu0 0
    %997 = vmatpush1.bf16.msra.mxu0 %v900
    %998 = vmatprep.subr.bf16.mxu0 0
    %999 = vmatpush1.bf16.msra.mxu0 %v901
    %1000 = vmatprep.subr.bf16.mxu0 0
    %1001 = vmatpush1.bf16.msra.mxu0 %v902
    %1002 = vmatprep.subr.bf16.mxu0 0
    %1003 = vmatpush1.bf16.msra.mxu0 %v903
    %1004 = vmatprep.subr.bf16.mxu0 0
    %1005 = vmatpush1.bf16.msra.mxu0 %v904
    %1006 = vmatprep.subr.bf16.mxu0 0
    %1007 = vmatpush1.bf16.msra.mxu0 %v905
    %1008 = vmatprep.subr.bf16.mxu0 0
    %1009 = vmatpush1.bf16.msra.mxu0 %v906
    %1010 = vmatprep.subr.bf16.mxu0 0
    %1011 = vmatpush1.bf16.msra.mxu0 %v907
    %1012 = vmatprep.subr.bf16.mxu0 0
    %1013 = vmatpush1.bf16.msra.mxu0 %v908
    %1014 = vmatprep.subr.bf16.mxu0 0
    %1015 = vmatpush1.bf16.msra.mxu0 %v909
    %1016 = vmatprep.subr.bf16.mxu0 0
    %1017 = vmatpush1.bf16.msra.mxu0 %v910
    %1018 = vmatprep.subr.bf16.mxu0 0
    %1019 = vmatpush1.bf16.msra.mxu0 %v911
    %1020 = vmatprep.subr.bf16.mxu0 0
    %1021 = vmatpush1.bf16.msra.mxu0 %v912
    %1022 = vmatprep.subr.bf16.mxu0 0
    %1023 = vmatpush1.bf16.msra.mxu0 %v913
    %1024 = vmatprep.subr.bf16.mxu0 0
    %1025 = vmatpush1.bf16.msra.mxu0 %v914
    %1026 = vmatprep.subr.bf16.mxu0 0
    %1027 = vmatpush1.bf16.msra.mxu0 %v915
    %1028 = vmatprep.mubr.bf16.mxu0 %v98
    %1029 = vmatmul.mubr.bf16.gmra.mrb[0].mxu0 %v97
    %v1030 = vpop.f32.mrb[0].mxu0
    %v1031 = vadd.f32 0.0, %v1030
    %v1032 = vpop.f32.mrb[0].mxu0
    %v1033 = vpop.f32.mrb[0].mxu0
    %v1034 = vadd.f32 0.0, %v1033
    %v1035 = vpop.f32.mrb[0].mxu0
    %1036 = vdwg.mxu0
    %1037 = vmatprep.subr.bf16.mxu0 0
    %1038 = vmatpush1.bf16.msra.mxu0 %v916
    %1039 = vmatprep.subr.bf16.mxu0 0
    %1040 = vmatpush1.bf16.msra.mxu0 %v917
    %1041 = vmatprep.subr.bf16.mxu0 0
    %1042 = vmatpush1.bf16.msra.mxu0 %v918
    %1043 = vmatprep.subr.bf16.mxu0 0
    %1044 = vmatpush1.bf16.msra.mxu0 %v919
    %1045 = vmatprep.subr.bf16.mxu0 0
    %1046 = vmatpush1.bf16.msra.mxu0 %v920
    %1047 = vmatprep.subr.bf16.mxu0 0
    %1048 = vmatpush1.bf16.msra.mxu0 %v921
    %1049 = vmatprep.subr.bf16.mxu0 0
    %1050 = vmatpush1.bf16.msra.mxu0 %v922
    %1051 = vmatprep.subr.bf16.mxu0 0
    %1052 = vmatpush1.bf16.msra.mxu0 %v923
    %1053 = vmatprep.subr.bf16.mxu0 0
    %1054 = vmatpush1.bf16.msra.mxu0 %v924
    %1055 = vmatprep.subr.bf16.mxu0 0
    %1056 = vmatpush1.bf16.msra.mxu0 %v925
    %1057 = vmatprep.subr.bf16.mxu0 0
    %1058 = vmatpush1.bf16.msra.mxu0 %v926
    %1059 = vmatprep.subr.bf16.mxu0 0
    %1060 = vmatpush1.bf16.msra.mxu0 %v927
    %1061 = vmatprep.subr.bf16.mxu0 0
    %1062 = vmatpush1.bf16.msra.mxu0 %v928
    %1063 = vmatprep.subr.bf16.mxu0 0
    %1064 = vmatpush1.bf16.msra.mxu0 %v929
    %1065 = vmatprep.subr.bf16.mxu0 0
    %1066 = vmatpush1.bf16.msra.mxu0 %v930
    %1067 = vmatprep.subr.bf16.mxu0 0
    %1068 = vmatpush1.bf16.msra.mxu0 %v931
    %1069 = vmatprep.mubr.bf16.mxu0 %v100
    %1070 = vmatmul.mubr.bf16.gmra.mrb[0].mxu0 %v99
    %v1071 = vpop.f32.mrb[0].mxu0
    %v1072 = vadd.f32 %v1031, %v1071
    %v1073 = vpop.f32.mrb[0].mxu0
    %v1074 = vpop.f32.mrb[0].mxu0
    %v1075 = vadd.f32 %v1034, %v1074
    %v1076 = vpop.f32.mrb[0].mxu0
    %1077 = vdwg.mxu0
    %1078 = vmatprep.subr.bf16.mxu0 0
    %1079 = vmatpush1.bf16.msra.mxu0 %v932
    %1080 = vmatprep.subr.bf16.mxu0 0
    %1081 = vmatpush1.bf16.msra.mxu0 %v933
    %1082 = vmatprep.subr.bf16.mxu0 0
    %1083 = vmatpush1.bf16.msra.mxu0 %v934
    %1084 = vmatprep.subr.bf16.mxu0 0
    %1085 = vmatpush1.bf16.msra.mxu0 %v935
    %1086 = vmatprep.subr.bf16.mxu0 0
    %1087 = vmatpush1.bf16.msra.mxu0 %v936
    %1088 = vmatprep.subr.bf16.mxu0 0
    %1089 = vmatpush1.bf16.msra.mxu0 %v937
    %1090 = vmatprep.subr.bf16.mxu0 0
    %1091 = vmatpush1.bf16.msra.mxu0 %v938
    %1092 = vmatprep.subr.bf16.mxu0 0
    %1093 = vmatpush1.bf16.msra.mxu0 %v939
    %1094 = vmatprep.subr.bf16.mxu0 0
    %1095 = vmatpush1.bf16.msra.mxu0 %v940
    %1096 = vmatprep.subr.bf16.mxu0 0
    %1097 = vmatpush1.bf16.msra.mxu0 %v941
    %1098 = vmatprep.subr.bf16.mxu0 0
    %1099 = vmatpush1.bf16.msra.mxu0 %v942
    %1100 = vmatprep.subr.bf16.mxu0 0
    %1101 = vmatpush1.bf16.msra.mxu0 %v943
    %1102 = vmatprep.subr.bf16.mxu0 0
    %1103 = vmatpush1.bf16.msra.mxu0 %v944
    %1104 = vmatprep.subr.bf16.mxu0 0
    %1105 = vmatpush1.bf16.msra.mxu0 %v945
    %1106 = vmatprep.subr.bf16.mxu0 0
    %1107 = vmatpush1.bf16.msra.mxu0 %v946
    %1108 = vmatprep.subr.bf16.mxu0 0
    %1109 = vmatpush1.bf16.msra.mxu0 %v947
    %1110 = vmatprep.mubr.bf16.mxu0 %v102
    %1111 = vmatmul.mubr.bf16.gmra.mrb[0].mxu0 %v101
    %v1112 = vpop.f32.mrb[0].mxu0
    %v1113 = vadd.f32 %v1072, %v1112
    %v1114 = vpop.f32.mrb[0].mxu0
    %v1115 = vpop.f32.mrb[0].mxu0
    %v1116 = vadd.f32 %v1075, %v1115
    %v1117 = vpop.f32.mrb[0].mxu0
    %1118 = vdwg.mxu0
    %v1119 = vmax.f32 %v1113, 0.0
    %v1120 = vmax.f32 %v1116, 0.0
    %v1121 = vld [vmem:[%s3] sm:$0x1]
    %v1122 = vld [vmem:[%s4] sm:$0x1]
    %1123 = vmatprep.subr.mxu0 0.0
    %1124 = vmatpush1.xpose.msra.mxu0 %v1119
    %1125 = vmatprep.subr.mxu0 0.0
    %1126 = vmatpush1.xpose.msra.mxu0 %v1120
    %1127 = vmatprep.subr.mxu0 0.0
    %1128 = vmatpush1.xpose.msra.mxu0 0.0
    %1129 = vmatprep.subr.mxu0 0.0
    %1130 = vmatpush1.xpose.msra.mxu0 0.0
    %1131 = vmatprep.subr.mxu0 0.0
    %1132 = vmatpush1.xpose.msra.mxu0 0.0
    %1133 = vmatprep.subr.mxu0 0.0
    %1134 = vmatpush1.xpose.msra.mxu0 0.0
    %1135 = vmatprep.subr.mxu0 0.0
    %1136 = vmatpush1.xpose.msra.mxu0 0.0
    %1137 = vmatprep.subr.mxu0 0.0
    %1138 = vmatpush1.xpose.msra.mxu0 0.0
    %1139 = vmatprep.subr.mxu0 0.0
    %1140 = vmatpush1.xpose.msra.mxu0 0.0
    %1141 = vmatprep.subr.mxu0 0.0
    %1142 = vmatpush1.xpose.msra.mxu0 0.0
    %1143 = vmatprep.subr.mxu0 0.0
    %1144 = vmatpush1.xpose.msra.mxu0 0.0
    %1145 = vmatprep.subr.mxu0 0.0
    %1146 = vmatpush1.xpose.msra.mxu0 0.0
    %1147 = vmatprep.subr.mxu0 0.0
    %1148 = vmatpush1.xpose.msra.mxu0 0.0
    %1149 = vmatprep.subr.mxu0 0.0
    %1150 = vmatpush1.xpose.msra.mxu0 0.0
    %1151 = vmatprep.subr.mxu0 0.0
    %1152 = vmatpush1.xpose.msra.mxu0 0.0
    %1153 = vmatprep.subr.mxu0 0.0
    %1154 = vmatpush1.xpose.msra.mxu0 0.0
    %1155 = vmatprep.subr.mxu0 0.0
    %1156 = vmatpush1.xpose.msra.mxu0 0.0
    %1157 = vmatprep.subr.mxu0 0.0
    %1158 = vmatpush1.xpose.msra.mxu0 0.0
    %1159 = vmatprep.subr.mxu0 0.0
    %1160 = vmatpush1.xpose.msra.mxu0 0.0
    %1161 = vmatprep.subr.mxu0 0.0
    %1162 = vmatpush1.xpose.msra.mxu0 0.0
    %1163 = vmatprep.subr.mxu0 0.0
    %1164 = vmatpush1.xpose.msra.mxu0 0.0
    %1165 = vmatprep.subr.mxu0 0.0
    %1166 = vmatpush1.xpose.msra.mxu0 0.0
    %1167 = vmatprep.subr.mxu0 0.0
    %1168 = vmatpush1.xpose.msra.mxu0 0.0
    %1169 = vmatprep.subr.mxu0 0.0
    %1170 = vmatpush1.xpose.msra.mxu0 0.0
    %1171 = vmatprep.subr.mxu0 0.0
    %1172 = vmatpush1.xpose.msra.mxu0 0.0
    %1173 = vmatprep.subr.mxu0 0.0
    %1174 = vmatpush1.xpose.msra.mxu0 0.0
    %1175 = vmatprep.subr.mxu0 0.0
    %1176 = vmatpush1.xpose.msra.mxu0 0.0
    %1177 = vmatprep.subr.mxu0 0.0
    %1178 = vmatpush1.xpose.msra.mxu0 0.0
    %1179 = vmatprep.subr.mxu0 0.0
    %1180 = vmatpush1.xpose.msra.mxu0 0.0
    %1181 = vmatprep.subr.mxu0 0.0
    %1182 = vmatpush1.xpose.msra.mxu0 0.0
    %1183 = vmatprep.subr.mxu0 0.0
    %1184 = vmatpush1.xpose.msra.mxu0 0.0
    %1185 = vmatprep.subr.mxu0 0.0
    %1186 = vmatpush1.xpose.msra.mxu0 0.0
    %1187 = vmatprep.mubr.f32.mxu0 0.0
    %1188 = vmatmul.mubr.f32.gmra.mrb[0].mxu0 %v1122
    %v1189 = vpop.f32.mrb[0].mxu0
    %v1190 = vadd.f32 0.0, %v1189
    %v1191 = vpop.f32.mrb[0].mxu0
    %1192 = vdwg.mxu0
    %1193 = vmatprep.subr.mxu0 0.0
    %1194 = vmatpush1.xpose.msra.mxu0 %v610
    %1195 = vmatprep.subr.mxu0 0.0
    %1196 = vmatpush1.xpose.msra.mxu0 %v611
    %1197 = vmatprep.subr.mxu0 0.0
    %1198 = vmatpush1.xpose.msra.mxu0 0.0
    %1199 = vmatprep.subr.mxu0 0.0
    %1200 = vmatpush1.xpose.msra.mxu0 0.0
    %1201 = vmatprep.subr.mxu0 0.0
    %1202 = vmatpush1.xpose.msra.mxu0 0.0
    %1203 = vmatprep.subr.mxu0 0.0
    %1204 = vmatpush1.xpose.msra.mxu0 0.0
    %1205 = vmatprep.subr.mxu0 0.0
    %1206 = vmatpush1.xpose.msra.mxu0 0.0
    %1207 = vmatprep.subr.mxu0 0.0
    %1208 = vmatpush1.xpose.msra.mxu0 0.0
    %1209 = vmatprep.subr.mxu0 0.0
    %1210 = vmatpush1.xpose.msra.mxu0 0.0
    %1211 = vmatprep.subr.mxu0 0.0
    %1212 = vmatpush1.xpose.msra.mxu0 0.0
    %1213 = vmatprep.subr.mxu0 0.0
    %1214 = vmatpush1.xpose.msra.mxu0 0.0
    %1215 = vmatprep.subr.mxu0 0.0
    %1216 = vmatpush1.xpose.msra.mxu0 0.0
    %1217 = vmatprep.subr.mxu0 0.0
    %1218 = vmatpush1.xpose.msra.mxu0 0.0
    %1219 = vmatprep.subr.mxu0 0.0
    %1220 = vmatpush1.xpose.msra.mxu0 0.0
    %1221 = vmatprep.subr.mxu0 0.0
    %1222 = vmatpush1.xpose.msra.mxu0 0.0
    %1223 = vmatprep.subr.mxu0 0.0
    %1224 = vmatpush1.xpose.msra.mxu0 0.0
    %1225 = vmatprep.subr.mxu0 0.0
    %1226 = vmatpush1.xpose.msra.mxu0 0.0
    %1227 = vmatprep.subr.mxu0 0.0
    %1228 = vmatpush1.xpose.msra.mxu0 0.0
    %1229 = vmatprep.subr.mxu0 0.0
    %1230 = vmatpush1.xpose.msra.mxu0 0.0
    %1231 = vmatprep.subr.mxu0 0.0
    %1232 = vmatpush1.xpose.msra.mxu0 0.0
    %1233 = vmatprep.subr.mxu0 0.0
    %1234 = vmatpush1.xpose.msra.mxu0 0.0
    %1235 = vmatprep.subr.mxu0 0.0
    %1236 = vmatpush1.xpose.msra.mxu0 0.0
    %1237 = vmatprep.subr.mxu0 0.0
    %1238 = vmatpush1.xpose.msra.mxu0 0.0
    %1239 = vmatprep.subr.mxu0 0.0
    %1240 = vmatpush1.xpose.msra.mxu0 0.0
    %1241 = vmatprep.subr.mxu0 0.0
    %1242 = vmatpush1.xpose.msra.mxu0 0.0
    %1243 = vmatprep.subr.mxu0 0.0
    %1244 = vmatpush1.xpose.msra.mxu0 0.0
    %1245 = vmatprep.subr.mxu0 0.0
    %1246 = vmatpush1.xpose.msra.mxu0 0.0
    %1247 = vmatprep.subr.mxu0 0.0
    %1248 = vmatpush1.xpose.msra.mxu0 0.0
    %1249 = vmatprep.subr.mxu0 0.0
    %1250 = vmatpush1.xpose.msra.mxu0 0.0
    %1251 = vmatprep.subr.mxu0 0.0
    %1252 = vmatpush1.xpose.msra.mxu0 0.0
    %1253 = vmatprep.subr.mxu0 0.0
    %1254 = vmatpush1.xpose.msra.mxu0 0.0
    %1255 = vmatprep.subr.mxu0 0.0
    %1256 = vmatpush1.xpose.msra.mxu0 0.0
    %1257 = vmatprep.mubr.f32.mxu0 0.0
    %1258 = vmatmul.mubr.f32.gmra.mrb[0].mxu0 %v1121
    %v1259 = vpop.f32.mrb[0].mxu0
    %v1260 = vadd.f32 %v1190, %v1259
    %v1261 = vpop.f32.mrb[0].mxu0
    %1262 = vdwg.mxu0
    %s1263 = sld [smem:[#allocation2]]
    %v1264 = vstv %s1263
    %v1265 = vadd.f32 %v1260, %v1264
    %v1266 = vxor.u32 %v1265, 2147483648
    %v1267 = vmul.f32 %v1266, 1.442695
    %v1268 = vpow.pop %v1267
    %v1269 = vadd.f32 %v1268, 1.0
    %v1270 = vrcp.pop %v1269
    %v1271 = vmul.f32 1.0, %v1270
    %vm1272 = vcmask 122880
    %1273 = vst.msk [vmem:[#allocation9] sm:$0x1] %vm1272, %v1271
    // Predicated region
    $region38: #{tpu_custom_call.1} parent=1 // pred_check
      _
    $region39: #{tpu_custom_call.1} parent=1 // pred_check_branch
      %1275 = sbr.rel (0) target = $region41
    $region40: #{tpu_custom_call.1} parent=1 // pred_region
      %s1277 = ssub.s32 16, 16
      %1278 = vsyncadd [#allocation5], %s1277
      %s1280 = sshll.u32 [#allocation9], 4
      %s1281 = int_to_ptr.vmem [resolvable:$true] %s1280
      %1283 = dma.vmem_to_hbm [thread:$0]  %s1281, 16, %s6, [#allocation5]
    $region41: #{tpu_custom_call.1} parent=1 // pred_fallthru
      _
    // Predicated region
    $region42: #{tpu_custom_call.1} parent=1 // pred_check
      _
    $region43: #{tpu_custom_call.1} parent=1 // pred_check_branch
      %1285 = sbr.rel (0) target = $region45
    $region44: #{tpu_custom_call.1} parent=1 // pred_region
      %1286 = dma.done [#allocation5], 16
    $region45: #{tpu_custom_call.1} parent=1 // pred_fallthru
      _
    %1287 = vsyncpa [#allocation4], 1
    %1288 = vsyncpa [#allocation7], 1
    %1289 = vsyncpa [#allocation5], 1

</llo_original>
